<compile_context>
chip_gen: v5e
topology: v5e:2x2
jax: 0.10.0
libtpu: 0.0.40
codegen_flags: <defaults>
</compile_context>

<pallas_src>
import functools

import jax
import jax.numpy as jnp
import numpy as np
from jax.experimental import pallas as pl
from jax.experimental.pallas import tpu as pltpu

_VMEM_LIMIT_BYTES = 32 * 1024 * 1024  # fits v5e (raise from 16MiB default), v6e, v7x


def _round_up(x, m):
    return ((x + m - 1) // m) * m


# --------------------------------------------------------------------------
# Kernels
# --------------------------------------------------------------------------
def _bn_stats_kernel(x_ref, sum_ref, sumsq_ref, *, n_rows, block_rows):
    """Accumulate per-feature sum and sum-of-squares over the row grid."""
    i = pl.program_id(0)

    @pl.when(i == 0)
    def _():
        sum_ref[...] = jnp.zeros_like(sum_ref)
        sumsq_ref[...] = jnp.zeros_like(sumsq_ref)

    x = x_ref[...].astype(jnp.float32)                      # (bN, D)
    if n_rows % block_rows != 0:                            # static check: partial tail block
        row = i * block_rows + jax.lax.broadcasted_iota(jnp.int32, x.shape, 0)
        x = jnp.where(row < n_rows, x, 0.0)
    sum_ref[...] += jnp.sum(x, axis=0, keepdims=True)       # (1, D)
    sumsq_ref[...] += jnp.sum(x * x, axis=0, keepdims=True)  # (1, D)


def _bn_apply_kernel(x_ref, scale_ref, shift_ref, o_ref):
    """out = x * scale + shift (per-feature affine), f32 compute."""
    x = x_ref[...].astype(jnp.float32)
    o_ref[...] = (x * scale_ref[...] + shift_ref[...]).astype(o_ref.dtype)


# --------------------------------------------------------------------------
# Wrapper
# --------------------------------------------------------------------------
def _pick_block_rows(n_rows, d_model, itemsize):
    # ~4 MiB per streaming block; with double-buffered input + output blocks
    # this stays well under the 32 MiB scoped-VMEM we request on every chip.
    target_bytes = 4 * 1024 * 1024
    rows = max(8, (target_bytes // max(1, d_model * itemsize)) // 8 * 8)
    return int(min(rows, _round_up(n_rows, 8)))


def _batch_stats(x2d, block_rows):
    n_rows, d = x2d.shape
    itemsize = jnp.dtype(x2d.dtype).itemsize
    grid = (pl.cdiv(n_rows, block_rows),)
    kernel = functools.partial(_bn_stats_kernel, n_rows=n_rows, block_rows=block_rows)
    return pl.pallas_call(
        kernel,
        out_shape=(jax.ShapeDtypeStruct((1, d), jnp.float32),
                   jax.ShapeDtypeStruct((1, d), jnp.float32)),
        grid=grid,
        in_specs=[pl.BlockSpec((block_rows, d), lambda i: (i, 0))],
        out_specs=(pl.BlockSpec((1, d), lambda i: (0, 0)),
                   pl.BlockSpec((1, d), lambda i: (0, 0))),
        compiler_params=pltpu.CompilerParams(
            dimension_semantics=("arbitrary",),     # resident accumulator across grid
            vmem_limit_bytes=_VMEM_LIMIT_BYTES),
        cost_estimate=pl.CostEstimate(
            flops=3 * n_rows * d, transcendentals=0,
            bytes_accessed=n_rows * d * itemsize + 2 * d * 4),
    )(x2d)


def _apply_affine(x2d, scale, shift, block_rows):
    n_rows, d = x2d.shape
    itemsize = jnp.dtype(x2d.dtype).itemsize
    grid = (pl.cdiv(n_rows, block_rows),)
    return pl.pallas_call(
        _bn_apply_kernel,
        out_shape=jax.ShapeDtypeStruct((n_rows, d), x2d.dtype),
        grid=grid,
        in_specs=[pl.BlockSpec((block_rows, d), lambda i: (i, 0)),
                  pl.BlockSpec((1, d), lambda i: (0, 0)),
                  pl.BlockSpec((1, d), lambda i: (0, 0))],
        out_specs=pl.BlockSpec((block_rows, d), lambda i: (i, 0)),
        compiler_params=pltpu.CompilerParams(
            dimension_semantics=("parallel",),      # independent row blocks (megacore on v7x)
            vmem_limit_bytes=_VMEM_LIMIT_BYTES),
        cost_estimate=pl.CostEstimate(
            flops=2 * n_rows * d, transcendentals=0,
            bytes_accessed=2 * n_rows * d * itemsize + 2 * d * 4),
    )(x2d, scale, shift)


def patchtst_batchnorm(inputs, gamma, beta, running_mean=None, running_var=None,
                       *, eps=1e-5, training=True, block_rows=None):
    """inputs: (B, S, D) -> (B, S, D), BatchNorm1d over the d_model features."""
    B, S, D = inputs.shape
    n_rows = B * S
    x2d = inputs.reshape(n_rows, D)                         # metadata-only reshape
    if block_rows is None:
        block_rows = _pick_block_rows(n_rows, D, jnp.dtype(inputs.dtype).itemsize)
    block_rows = int(block_rows)

    if training:
        s, sq = _batch_stats(x2d, block_rows)               # (1, D), (1, D), f32
        mean = s / n_rows
        var = jnp.maximum(sq / n_rows - mean * mean, 0.0)   # biased variance (PyTorch train)
    else:
        mean = running_mean.reshape(1, D).astype(jnp.float32)
        var = running_var.reshape(1, D).astype(jnp.float32)

    inv_std = jax.lax.rsqrt(var + eps)
    scale = gamma.reshape(1, D).astype(jnp.float32) * inv_std
    shift = beta.reshape(1, D).astype(jnp.float32) - mean * scale

    out2d = _apply_affine(x2d, scale, shift, block_rows)
    return out2d.reshape(B, S, D)


# --------------------------------------------------------------------------
# Pure-JAX reference mirroring the PyTorch forward
# --------------------------------------------------------------------------
def _reference(inputs, gamma, beta, running_mean, running_var, eps, training):
    if training:
        mean = jnp.mean(inputs, axis=(0, 1))
        var = jnp.var(inputs, axis=(0, 1))                  # biased, as BatchNorm uses
    else:
        mean, var = running_mean, running_var
    return (inputs - mean) / jnp.sqrt(var + eps) * gamma + beta


if __name__ == "__main__":
    # (batch, sequence_length, d_model); PatchTST default d_model=128 (lane-dense).
    B, S, D = 4, 64, 128
    eps = 1e-5

    key = jax.random.PRNGKey(0)
    k_x, k_g, k_b, k_rm, k_rv, k_x2 = jax.random.split(key, 6)

    x = jax.random.normal(k_x, (B, S, D), dtype=jnp.float32)
    gamma = 1.0 + 0.1 * jax.random.normal(k_g, (D,), dtype=jnp.float32)
    beta = 0.1 * jax.random.normal(k_b, (D,), dtype=jnp.float32)
    running_mean = 0.2 * jax.random.normal(k_rm, (D,), dtype=jnp.float32)
    running_var = jax.random.uniform(k_rv, (D,), jnp.float32, 0.5, 1.5)

    # Training-mode forward (module's default state): batch statistics.
    out_train = jax.block_until_ready(
        patchtst_batchnorm(x, gamma, beta, eps=eps, training=True, block_rows=64))
    ref_train = _reference(x, gamma, beta, None, None, eps, True)
    np.testing.assert_allclose(np.asarray(out_train), np.asarray(ref_train),
                               rtol=1e-5, atol=1e-5)

    # Eval-mode forward: running statistics.
    out_eval = jax.block_until_ready(
        patchtst_batchnorm(x, gamma, beta, running_mean, running_var,
                           eps=eps, training=False, block_rows=64))
    ref_eval = _reference(x, gamma, beta, running_mean, running_var, eps, False)
    np.testing.assert_allclose(np.asarray(out_eval), np.asarray(ref_eval),
                               rtol=1e-5, atol=1e-5)

    # Ragged case: B*S not a multiple of block_rows exercises the in-kernel
    # row mask (stats) and partial output blocks (apply).
    x_odd = jax.random.normal(k_x2, (3, 50, D), dtype=jnp.float32)
    out_odd = jax.block_until_ready(
        patchtst_batchnorm(x_odd, gamma, beta, eps=eps, training=True, block_rows=64))
    ref_odd = _reference(x_odd, gamma, beta, None, None, eps, True)
    np.testing.assert_allclose(np.asarray(out_odd), np.asarray(ref_odd),
                               rtol=1e-5, atol=1e-5)

    assert out_train.shape == (B, S, D)
    print("KERNEL_OK")
</pallas_src>

<mosaic_0001>
module attributes {stable_mosaic.version = 11 : i64} {
  func.func @_bn_stats_kernel(%arg0: i32, %arg1: memref<64x128xf32, #tpu.memory_space<vmem>>, %arg2: memref<1x128xf32, #tpu.memory_space<vmem>>, %arg3: memref<1x128xf32, #tpu.memory_space<vmem>>) attributes {dimension_semantics = [#tpu.dimension_semantics<arbitrary>], iteration_bounds = array<i64: 4>, scalar_prefetch = 0 : i64, scratch_operands = 0 : i64, tpu.core_type = #tpu.core_type<tc>, window_params = [{transform_indices = @transform_0, window_bounds = array<i64: 64, 128>}, {pipeline_mode = #tpu.pipeline_mode<synchronous>, transform_indices = @transform_1, window_bounds = array<i64: 1, 128>}, {pipeline_mode = #tpu.pipeline_mode<synchronous>, transform_indices = @transform_2, window_bounds = array<i64: 1, 128>}]} {
    %c0_i32 = arith.constant 0 : i32
    %0 = arith.cmpi eq, %arg0, %c0_i32 : i32
    %1 = arith.extui %0 : i1 to i32
    %c0_i32_0 = arith.constant 0 : i32
    %2 = arith.cmpi ne, %1, %c0_i32_0 : i32
    scf.if %2 {
      %cst_11 = arith.constant 0.000000e+00 : f32
      %15 = vector.broadcast %cst_11 : f32 to vector<1x128xf32>
      %c0_12 = arith.constant 0 : index
      %c0_13 = arith.constant 0 : index
      %16 = vector.load %arg2[%c0_12, %c0_13] : memref<1x128xf32, #tpu.memory_space<vmem>>, vector<1x128xf32>
      tpu.vector_store %arg2[%c0_12, %c0_13], %15 {strides = array<i32>} : memref<1x128xf32, #tpu.memory_space<vmem>>, vector<1x128xf32>,
      %cst_14 = arith.constant 0.000000e+00 : f32
      %17 = vector.broadcast %cst_14 : f32 to vector<1x128xf32>
      %c0_15 = arith.constant 0 : index
      %c0_16 = arith.constant 0 : index
      %18 = vector.load %arg3[%c0_15, %c0_16] : memref<1x128xf32, #tpu.memory_space<vmem>>, vector<1x128xf32>
      tpu.vector_store %arg3[%c0_15, %c0_16], %17 {strides = array<i32>} : memref<1x128xf32, #tpu.memory_space<vmem>>, vector<1x128xf32>,
    } else {
    }
    %c0 = arith.constant 0 : index
    %c0_1 = arith.constant 0 : index
    %3 = vector.load %arg1[%c0, %c0_1] : memref<64x128xf32, #tpu.memory_space<vmem>>, vector<64x128xf32>
    %c0_2 = arith.constant 0 : index
    %c0_3 = arith.constant 0 : index
    %4 = vector.load %arg2[%c0_2, %c0_3] : memref<1x128xf32, #tpu.memory_space<vmem>>, vector<1x128xf32>
    %cst = arith.constant dense<0.000000e+00> : vector<128xf32>
    %5 = vector.multi_reduction <add>, %3, %cst [0] : vector<64x128xf32> to vector<128xf32>
    %6 = vector.shape_cast %5 : vector<128xf32> to vector<1x128xf32>
    %7 = arith.addf %4, %6 : vector<1x128xf32>
    %c0_4 = arith.constant 0 : index
    %c0_5 = arith.constant 0 : index
    %8 = vector.load %arg2[%c0_4, %c0_5] : memref<1x128xf32, #tpu.memory_space<vmem>>, vector<1x128xf32>
    tpu.vector_store %arg2[%c0_4, %c0_5], %7 {strides = array<i32>} : memref<1x128xf32, #tpu.memory_space<vmem>>, vector<1x128xf32>,
    %c0_6 = arith.constant 0 : index
    %c0_7 = arith.constant 0 : index
    %9 = vector.load %arg3[%c0_6, %c0_7] : memref<1x128xf32, #tpu.memory_space<vmem>>, vector<1x128xf32>
    %10 = arith.mulf %3, %3 : vector<64x128xf32>
    %cst_8 = arith.constant dense<0.000000e+00> : vector<128xf32>
    %11 = vector.multi_reduction <add>, %10, %cst_8 [0] : vector<64x128xf32> to vector<128xf32>
    %12 = vector.shape_cast %11 : vector<128xf32> to vector<1x128xf32>
    %13 = arith.addf %9, %12 : vector<1x128xf32>
    %c0_9 = arith.constant 0 : index
    %c0_10 = arith.constant 0 : index
    %14 = vector.load %arg3[%c0_9, %c0_10] : memref<1x128xf32, #tpu.memory_space<vmem>>, vector<1x128xf32>
    tpu.vector_store %arg3[%c0_9, %c0_10], %13 {strides = array<i32>} : memref<1x128xf32, #tpu.memory_space<vmem>>, vector<1x128xf32>,
    return
  }
  func.func @transform_0(%arg0: i32) -> (i32, i32) {
    %c0_i32 = arith.constant 0 : i32
    %c0_i32_0 = arith.constant 0 : i32
    return %arg0, %c0_i32 : i32, i32
  }
  func.func @transform_1(%arg0: i32) -> (i32, i32) {
    %c0_i32 = arith.constant 0 : i32
    %c0_i32_0 = arith.constant 0 : i32
    %c0_i32_1 = arith.constant 0 : i32
    return %c0_i32, %c0_i32_0 : i32, i32
  }
  func.func @transform_2(%arg0: i32) -> (i32, i32) {
    %c0_i32 = arith.constant 0 : i32
    %c0_i32_0 = arith.constant 0 : i32
    %c0_i32_1 = arith.constant 0 : i32
    return %c0_i32, %c0_i32_0 : i32, i32
  }
}

</mosaic_0001>

<llo_original>
// kernel: tpu_custom_call.1
$region0: #{tpu_custom_call.1}
  #allocation0 [shape = 'u32[]', space=smem, size = 0x4, offset = 0x4, fixed_abs, tag = 'smem constant byte address 0x4 - core index']
  #allocation1 [shape = 'u32[72,128]{1,0:T(1,128)}', space=vmem, size = 0x9000, scoped, tag = 'internal scratch']
  %s0 = inlined_call_operand.hbm [shape: f32[256,128], index: 0, kind: input, shape index: {}]
  %s1 = inlined_call_operand.hbm [shape: f32[1,128], index: 1, kind: output, shape index: {0}]
  %s2 = inlined_call_operand.hbm [shape: f32[1,128], index: 2, kind: output, shape index: {1}]
  %3 = xla_tuple %s1, %s2
  %s4 = sld [smem:[#allocation0]]
  $region53: #{tpu_custom_call.1} parent=0
    _
  %s6 = ssub.s32 1, %s4
  %s7 = scalar_select 0, %s6, %s4
  $region1: #{tpu_custom_call.1} parent=0
    #allocation2 [shape = 'u8[65536]{0}', space=vmem, size = 0x10000, scoped, tag = 'input window, operand 0']
    #allocation3 [shape = 's32[2]{0}', space=sflag, size = 0x8, scoped, tag = 'scoped memory for tpu_custom_call.1']
    #allocation4 [shape = 's32[2]{0}', space=sflag, size = 0x8, scoped, tag = 'scoped memory for tpu_custom_call.1']
    #allocation5 [shape = 'u8[512]{0}', space=vmem, size = 0x400, scoped, tag = 'output window, operand 0, single buffered']
    #allocation6 [shape = 'u8[512]{0}', space=vmem, size = 0x400, scoped, tag = 'output window, operand 1, single buffered']
    #allocation7 [shape = 's32[1]{0}', space=sflag, size = 0x4, scoped, tag = 'scoped memory for tpu_custom_call.1']
    %8 = vsyncpa [#allocation3], 0
    %s9 = scalar_lea.sflag [#allocation3], 1
    %10 = vsyncpa %s9, 0
    %11 = vsyncpa [#allocation4], 0
    %12 = vsyncpa [#allocation7], 0
    loop: start=0, step=1, limit=6
    $region2: #{tpu_custom_call.1} parent=1 // loop_pre_header
      _
    $region3: #{tpu_custom_call.1} parent=1 // loop_header
      %s14 = sphi 0, %s18
      %p15 = scmp.ge.s32.totalorder %s14, 6
      %s24 = sphi 0, %s26
      %s27 = sphi 0, %s24
      %s28 = sphi 0, %s27
      %s44 = sphi 0, %s28
      %s48 = sphi 0, %s48
      %s50 = sphi 0, %s48
      %s51 = sphi 0, %s50
      %s65 = sphi 0, %s51
      %s69 = sphi 0, %s69
      %s71 = sphi 0, %s69
      %s72 = sphi 0, %s71
      %s86 = sphi 0, %s72
    $region4: #{tpu_custom_call.1} parent=1 // loop_header_branch
      %17 = sbr.rel (%p15) target = $region8
    $region5: #{tpu_custom_call.1} parent=1 // loop_body
      %s19 = ssub.s32 %s14, 1
      %s20 = ssub.s32 %s14, 2
      %s21 = sadd.s32 %s14, 1
      %s22 = ssub.s32 %s14, %s21
      %p23 = scmp.eq.s32.totalorder %s22, 0
      %s25 = sadd.s32 %s24, 1
      %s26 = scalar_select %p23, %s24, %s25
      %p29 = pneg %p23
      %p30 = scmp.eq.s32.totalorder %s14, 3
      %p31 = por %p29, %p30
      %p32 = scmp.ne.s32.totalorder %s24, %s27
      %p33 = scmp.eq.s32.totalorder %s14, 0
      %p34 = por %p32, %p33
      %p35 = scmp.ne.s32.totalorder %s24, %s27
      %p36 = scmp.eq.s32.totalorder %s19, 3
      %p37 = por %p35, %p36
      %p38 = scmp.ne.s32.totalorder %s27, %s28
      %p39 = scmp.eq.s32.totalorder %s19, 0
      %p40 = por %p38, %p39
      %p41 = scmp.ne.s32.totalorder %s27, %s28
      %p42 = scmp.eq.s32.totalorder %s20, 3
      %p43 = por %p41, %p42
      %p45 = scmp.ne.s32.totalorder %s28, %s44
      %p46 = scmp.eq.s32.totalorder %s20, 0
      %p47 = por %p45, %p46
      %s49 = sadd.s32 %s48, 1
      %p52 = scmp.eq.s32.totalorder %s14, 3
      %p53 = scmp.ne.s32.totalorder %s48, %s50
      %p54 = scmp.eq.s32.totalorder %s14, 0
      %p55 = por %p53, %p54
      %p56 = scmp.ne.s32.totalorder %s48, %s50
      %p57 = scmp.eq.s32.totalorder %s19, 3
      %p58 = por %p56, %p57
      %p59 = scmp.ne.s32.totalorder %s50, %s51
      %p60 = scmp.eq.s32.totalorder %s19, 0
      %p61 = por %p59, %p60
      %p62 = scmp.ne.s32.totalorder %s50, %s51
      %p63 = scmp.eq.s32.totalorder %s20, 3
      %p64 = por %p62, %p63
      %p66 = scmp.ne.s32.totalorder %s51, %s65
      %p67 = scmp.eq.s32.totalorder %s20, 0
      %p68 = por %p66, %p67
      %s70 = sadd.s32 %s69, 1
      %p73 = scmp.eq.s32.totalorder %s14, 3
      %p74 = scmp.ne.s32.totalorder %s69, %s71
      %p75 = scmp.eq.s32.totalorder %s14, 0
      %p76 = por %p74, %p75
      %p77 = scmp.ne.s32.totalorder %s69, %s71
      %p78 = scmp.eq.s32.totalorder %s19, 3
      %p79 = por %p77, %p78
      %p80 = scmp.ne.s32.totalorder %s71, %s72
      %p81 = scmp.eq.s32.totalorder %s19, 0
      %p82 = por %p80, %p81
      %p83 = scmp.ne.s32.totalorder %s71, %s72
      %p84 = scmp.eq.s32.totalorder %s20, 3
      %p85 = por %p83, %p84
      %p87 = scmp.ne.s32.totalorder %s72, %s86
      %p88 = scmp.eq.s32.totalorder %s20, 0
      %p89 = por %p87, %p88
      %p90 = scmp.le.s32.totalorder 1, %s14
      %p91 = scmp.lt.s32.totalorder %s14, 5
      %p92 = pnand %p90, %p91
      %p93 = pneg %p92
      // Predicated region
      $region9: #{tpu_custom_call.1} parent=5 // pred_check
        _
      $region10: #{tpu_custom_call.1} parent=5 // pred_check_branch
        %95 = sbr.rel (%p92) target = $region12
      $region11: #{tpu_custom_call.1} parent=5 // pred_region
        %s96 = ssub.s32 %s14, 1
      $region12: #{tpu_custom_call.1} parent=5 // pred_fallthru
        _
      %p97 = scmp.lt.s32.totalorder %s14, 4
      // Predicated region
      $region13: #{tpu_custom_call.1} parent=5 // pred_check
        %p98 = pneg %p97
      $region14: #{tpu_custom_call.1} parent=5 // pred_check_branch
        %100 = sbr.rel (%p98) target = $region16
      $region15: #{tpu_custom_call.1} parent=5 // pred_region
        // Predicated region
        $region17: #{tpu_custom_call.1} parent=15 // pred_check
          %p101 = pneg %p34
        $region18: #{tpu_custom_call.1} parent=15 // pred_check_branch
          %103 = sbr.rel (%p101) target = $region20
        $region19: #{tpu_custom_call.1} parent=15 // pred_region
          %s104 = sand.u32 %s24, 1
          %s105 = scalar_lea.sflag [#allocation3], %s104
          %s106 = sand.u32 %s24, 1
          %s107 = smul.addr %s106, 64
          %s108 = scalar_lea.vmem [#allocation2], %s107
          %s109 = smul.u32 8, %s14
          %111 = vsyncadd %s105, 0
          %s112 = smul.addr %s109, 8
          %s113 = scalar_lea.hbm %s0, %s112
          %s114 = sshll.u32 %s113, 4
          %s115 = int_to_ptr.hbm [resolvable:$true] %s114
          %s116 = sshll.u32 %s108, 4
          %s117 = int_to_ptr.vmem [resolvable:$true] %s116
          %122 = dma.hbm_to_vmem [thread:$0]  %s115, 1024, %s117, %s105, 128, 128, 8
        $region20: #{tpu_custom_call.1} parent=15 // pred_fallthru
          _
      $region16: #{tpu_custom_call.1} parent=5 // pred_fallthru
        _
      %p123 = scmp.le.s32.totalorder 1, %s14
      %p124 = scmp.lt.s32.totalorder %s14, 5
      %p125 = pnand %p123, %p124
      %p126 = pneg %p125
      // Predicated region
      $region21: #{tpu_custom_call.1} parent=5 // pred_check
        _
      $region22: #{tpu_custom_call.1} parent=5 // pred_check_branch
        %128 = sbr.rel (%p125) target = $region24
      $region23: #{tpu_custom_call.1} parent=5 // pred_region
        %s129 = ssub.s32 %s14, 1
        %s130 = sand.u32 %s27, 1
        %s131 = scalar_lea.sflag [#allocation3], %s130
        %s132 = sand.u32 %s27, 1
        %s133 = smul.addr %s132, 64
        %s134 = scalar_lea.vmem [#allocation2], %s133
        // Predicated region
        $region25: #{tpu_custom_call.1} parent=23 // pred_check
          %p135 = pneg %p40
        $region26: #{tpu_custom_call.1} parent=23 // pred_check_branch
          %137 = sbr.rel (%p135) target = $region28
        $region27: #{tpu_custom_call.1} parent=23 // pred_region
          %139 = dma.done %s131, 1024
        $region28: #{tpu_custom_call.1} parent=23 // pred_fallthru
          _
        %s140 = sand.u32 %s27, 1
        %s141 = scalar_lea.sflag [#allocation3], %s140
        %s142 = sand.u32 %s27, 1
        %s143 = smul.addr %s142, 64
        %s144 = scalar_lea.vmem [#allocation2], %s143
        %p145 = pneg %p40
        %p146 = pneg %p37
        %p147 = pneg %p61
        %p148 = pneg %p58
        %p149 = pneg %p82
        %p150 = pneg %p79
        %s151 = smul.u32 8, %s19
        %p152 = scmp.eq.s32.totalorder %s19, 0
        // Predicated region
        $region29: #{tpu_custom_call.1} parent=23 // pred_check
          %p153 = pneg %p152
        $region30: #{tpu_custom_call.1} parent=23 // pred_check_branch
          %155 = sbr.rel (%p153) target = $region32
        $region31: #{tpu_custom_call.1} parent=23 // pred_region
          %156 = vst [vmem:[#allocation5] sm:$0x1] 0.0
          %157 = vst [vmem:[#allocation6] sm:$0x1] 0.0
        $region32: #{tpu_custom_call.1} parent=23 // pred_fallthru
          _
        %v158 = vld [vmem:[%s134] sm:$0xff]
        %v159 = vld [vmem:[%s134 + $0x8] sm:$0xff]
        %v160 = vld [vmem:[%s134 + $0x10] sm:$0xff]
        %v161 = vld [vmem:[%s134 + $0x18] sm:$0xff]
        %v162 = vld [vmem:[%s134 + $0x20] sm:$0xff]
        %v163 = vld [vmem:[%s134 + $0x28] sm:$0xff]
        %v164 = vld [vmem:[%s134 + $0x30] sm:$0xff]
        %v165 = vld [vmem:[%s134 + $0x38] sm:$0xff]
        %v166 = vld [vmem:[#allocation5] sm:$0x1]
        %v167 = vadd.f32 %v158, %v159
        %v168 = vadd.f32 %v167, %v160
        %v169 = vadd.f32 %v168, %v161
        %v170 = vadd.f32 %v169, %v162
        %v171 = vadd.f32 %v170, %v163
        %v172 = vadd.f32 %v171, %v164
        %v173 = vadd.f32 %v172, %v165
        %v174 = vrot.slane %v173, 4
        %v175 = vadd.f32 %v173, %v174
        %v176 = vrot.slane %v175, 2
        %v177 = vadd.f32 %v175, %v176
        %v178 = vrot.slane %v177, 1
        %v179 = vadd.f32 %v177, %v178
        %v180 = vadd.f32 %v166, %v179
        %181 = vst [vmem:[#allocation5] sm:$0x1] %v180
        %v182 = vld [vmem:[#allocation6] sm:$0x1]
        %v183 = vmul.f32 %v158, %v158
        %v184 = vmul.f32 %v159, %v159
        %v185 = vmul.f32 %v160, %v160
        %v186 = vmul.f32 %v161, %v161
        %v187 = vmul.f32 %v162, %v162
        %v188 = vmul.f32 %v163, %v163
        %v189 = vmul.f32 %v164, %v164
        %v190 = vmul.f32 %v165, %v165
        %v191 = vadd.f32 %v183, %v184
        %v192 = vadd.f32 %v191, %v185
        %v193 = vadd.f32 %v192, %v186
        %v194 = vadd.f32 %v193, %v187
        %v195 = vadd.f32 %v194, %v188
        %v196 = vadd.f32 %v195, %v189
        %v197 = vadd.f32 %v196, %v190
        %v198 = vrot.slane %v197, 4
        %v199 = vadd.f32 %v197, %v198
        %v200 = vrot.slane %v199, 2
        %v201 = vadd.f32 %v199, %v200
        %v202 = vrot.slane %v201, 1
        %v203 = vadd.f32 %v201, %v202
        %v204 = vadd.f32 %v182, %v203
        %205 = vst [vmem:[#allocation6] sm:$0x1] %v204
        // Predicated region
        $region33: #{tpu_custom_call.1} parent=23 // pred_check
          %p206 = pneg %p58
        $region34: #{tpu_custom_call.1} parent=23 // pred_check_branch
          %208 = sbr.rel (%p206) target = $region36
        $region35: #{tpu_custom_call.1} parent=23 // pred_region
          %210 = vsyncadd [#allocation4], 0
          %s212 = sshll.u32 [#allocation5], 4
          %s213 = int_to_ptr.vmem [resolvable:$true] %s212
          %s214 = sshll.u32 %s1, 4
          %s215 = int_to_ptr.hbm [resolvable:$true] %s214
          %217 = dma.vmem_to_hbm [thread:$0]  %s213, 16, %s215, [#allocation4]
        $region36: #{tpu_custom_call.1} parent=23 // pred_fallthru
          _
        // Predicated region
        $region37: #{tpu_custom_call.1} parent=23 // pred_check
          %p218 = pneg %p79
        $region38: #{tpu_custom_call.1} parent=23 // pred_check_branch
          %220 = sbr.rel (%p218) target = $region40
        $region39: #{tpu_custom_call.1} parent=23 // pred_region
          %222 = vsyncadd [#allocation7], 0
          %s224 = sshll.u32 [#allocation6], 4
          %s225 = int_to_ptr.vmem [resolvable:$true] %s224
          %s226 = sshll.u32 %s2, 4
          %s227 = int_to_ptr.hbm [resolvable:$true] %s226
          %229 = dma.vmem_to_hbm [thread:$0]  %s225, 16, %s227, [#allocation7]
        $region40: #{tpu_custom_call.1} parent=23 // pred_fallthru
          _
        // Predicated region
        $region41: #{tpu_custom_call.1} parent=23 // pred_check
          %p230 = pneg %p58
        $region42: #{tpu_custom_call.1} parent=23 // pred_check_branch
          %232 = sbr.rel (%p230) target = $region44
        $region43: #{tpu_custom_call.1} parent=23 // pred_region
          %234 = dma.done [#allocation4], 16
        $region44: #{tpu_custom_call.1} parent=23 // pred_fallthru
          _
        // Predicated region
        $region45: #{tpu_custom_call.1} parent=23 // pred_check
          %p235 = pneg %p79
        $region46: #{tpu_custom_call.1} parent=23 // pred_check_branch
          %237 = sbr.rel (%p235) target = $region48
        $region47: #{tpu_custom_call.1} parent=23 // pred_region
          %239 = dma.done [#allocation7], 16
        $region48: #{tpu_custom_call.1} parent=23 // pred_fallthru
          _
      $region24: #{tpu_custom_call.1} parent=5 // pred_fallthru
        _
      %p240 = scmp.le.s32.totalorder 2, %s14
      // Predicated region
      $region49: #{tpu_custom_call.1} parent=5 // pred_check
        %p241 = pneg %p240
      $region50: #{tpu_custom_call.1} parent=5 // pred_check_branch
        %243 = sbr.rel (%p241) target = $region52
      $region51: #{tpu_custom_call.1} parent=5 // pred_region
        %s244 = ssub.s32 %s14, 2
      $region52: #{tpu_custom_call.1} parent=5 // pred_fallthru
        _
    $region6: #{tpu_custom_call.1} parent=1 // loop_footer
      %s18 = sadd.s32 1, %s14
    $region7: #{tpu_custom_call.1} parent=1 // loop_footer_branch
      %13 = sbr.rel target = $region3
    $region8: #{tpu_custom_call.1} parent=1 // loop_exit
      _
    %245 = vsyncpa [#allocation3], 1
    %s246 = scalar_lea.sflag [#allocation3], 1
    %247 = vsyncpa %s246, 1
    %248 = vsyncpa [#allocation4], 1
    %s249 = scalar_lea.sflag [#allocation4], 1
    %250 = vsyncpa %s249, 1
    %251 = vsyncpa [#allocation7], 1

</llo_original>
